<compile_context>
chip_gen: v7x
topology: tpu7x:2x2x1
jax: 0.10.0
libtpu: 0.0.40
codegen_flags: <defaults>
</compile_context>

<pallas_src>
import functools

import jax
import jax.numpy as jnp
from jax.experimental import pallas as pl
from jax.experimental.pallas import tpu as pltpu

EPS = 1e-5          # PyTorch nn.LayerNorm default
_LANE = 128


def _round_up(a, b):
    return (a + b - 1) // b * b


def _vmem_capacity_bytes():
    try:
        return int(pltpu.get_tpu_info().vmem_capacity_bytes)
    except Exception:   # no info available -> assume the smallest (v7x per-TC)
        return 64 * 2**20


def _default_block_rows(vmem_cap):
    # v5e/v6e: 128 MiB VMEM -> bm=512 pushes AI past the HBM ridge.
    # v7x:     64  MiB VMEM -> bm=384 keeps double-buffers + weight tile resident.
    return 512 if vmem_cap >= 120 * 2**20 else 384


def prenorm_kernel(x_ref, g_ref, b_ref, w_ref, wb_ref, o_ref, y_ref):
    # ---- LayerNorm (f32 stats), hoisted: only on the first N tile of a row block ----
    @pl.when(pl.program_id(1) == 0)
    def _():
        x = x_ref[...].astype(jnp.float32)                        # (bm, D)
        mean = jnp.mean(x, axis=-1, keepdims=True)
        centered = x - mean
        var = jnp.mean(centered * centered, axis=-1, keepdims=True)
        x_norm = centered * jax.lax.rsqrt(var + EPS)
        y = x_norm * g_ref[...].astype(jnp.float32) + b_ref[...].astype(jnp.float32)
        y_ref[...] = y.astype(y_ref.dtype)                        # bf16 cache

    # ---- fn := Linear: bf16 MXU matmul, f32 accumulation ----
    out = jnp.dot(y_ref[...], w_ref[...], preferred_element_type=jnp.float32)
    o_ref[...] = (out + wb_ref[...].astype(jnp.float32)).astype(o_ref.dtype)


def prepare_weights(w, w_bias, *, block_cols=512):
    """One-time weight prep: pad D_out to a lane-dense multiple of 128 and cast
    to bf16.  Hoisted out of the per-call (jitted) path — call once per weight."""
    D, D_out = w.shape
    # tn: lane-dense, at most block_cols; shrink for very large D so the bf16
    # weight tile still fits a v7x-sized VMEM budget.
    cols = block_cols if D < 8192 else max(256, block_cols // 2)
    tn = min(_round_up(D_out, _LANE), _round_up(cols, _LANE))
    dout_p = _round_up(D_out, tn)
    if dout_p != D_out:
        w = jnp.pad(w, ((0, 0), (0, dout_p - D_out)))
        w_bias = jnp.pad(w_bias, ((0, 0), (0, dout_p - D_out)))
    return w.astype(jnp.bfloat16), w_bias.astype(jnp.float32), D_out, tn


@functools.partial(jax.jit, static_argnames=("d_out", "tn", "block_rows"))
def prenorm_linear_prepared(x, gamma, beta, w_bf16, wb_p, *, d_out, tn,
                            block_rows=None):
    """x: (B, S, D). gamma/beta: (1, D). w_bf16: (D, dout_p) bf16, wb_p: (1, dout_p)
    f32 — both produced by prepare_weights()."""
    B, S, D = x.shape
    dout_p = w_bf16.shape[1]
    n_grid = dout_p // tn
    rows = B * S
    x2 = x.reshape(rows, D)

    vmem_cap = _vmem_capacity_bytes()
    if block_rows is None:
        block_rows = _default_block_rows(vmem_cap)

    # ---- M (row) tiling: clamp for tiny inputs, pad only the remainder.
    sub = {4: 8, 2: 16, 1: 32}.get(x.dtype.itemsize, 8)      # sublane granule
    bm = min(block_rows, _round_up(rows, sub))
    m_grid = _round_up(rows, bm) // bm
    # v7x megacore: never leave a core idle on a 1x1 grid — split M in half.
    if m_grid * n_grid == 1 and rows > sub:
        half = _round_up((rows + 1) // 2, sub)
        if half < bm:
            bm = half

    # ---- honest VMEM budget (tiles + LN scratch + in-kernel f32 temporaries);
    #      shrink bm if it would not fit the per-core physical VMEM.
    xb = x.dtype.itemsize
    w_bufs = 1 if n_grid == 1 else 2

    def _needed(bm_):
        return (2 * bm_ * D * xb               # x double-buffer
                + 2 * bm_ * tn * xb            # output double-buffer
                + w_bufs * D * tn * 2          # bf16 weight tile(s)
                + bm_ * D * 2                  # bf16 LN scratch (persistent)
                + 3 * bm_ * D * 4              # f32 LN temporaries (j == 0 only)
                + 2 * D * 4 + w_bufs * tn * 4)

    while _needed(bm) > int(0.7 * vmem_cap) and bm > sub:
        bm = max(sub, _round_up(bm // 2, sub))

    rows_p = _round_up(rows, bm)
    m_grid = rows_p // bm
    if rows_p != rows:
        x2 = jnp.pad(x2, ((0, rows_p - rows), (0, 0)))

    vmem_needed = _needed(bm)
    vmem_limit = max(int(1.25 * vmem_needed) + (4 << 20), 32 << 20)
    vmem_limit = min(vmem_limit, int(0.8 * vmem_cap))   # never the whole VMEM (v7x!)

    single = pl.Buffered(1)
    in_specs = [
        # x block index depends only on i -> not re-DMA'd across the inner N loop.
        pl.BlockSpec((bm, D), lambda i, j: (i, 0)),
        pl.BlockSpec((1, D), lambda i, j: (0, 0), pipeline_mode=single),    # gamma
        pl.BlockSpec((1, D), lambda i, j: (0, 0), pipeline_mode=single),    # beta
    ]
    if n_grid == 1:   # weight block index constant -> single-buffer it too
        in_specs += [
            pl.BlockSpec((D, tn), lambda i, j: (0, j), pipeline_mode=single),
            pl.BlockSpec((1, tn), lambda i, j: (0, j), pipeline_mode=single),
        ]
    else:
        in_specs += [
            pl.BlockSpec((D, tn), lambda i, j: (0, j)),
            pl.BlockSpec((1, tn), lambda i, j: (0, j)),
        ]

    out = pl.pallas_call(
        prenorm_kernel,
        out_shape=jax.ShapeDtypeStruct((rows_p, dout_p), x.dtype),
        grid_spec=pltpu.PrefetchScalarGridSpec(
            num_scalar_prefetch=0,
            grid=(m_grid, n_grid),
            in_specs=in_specs,
            out_specs=pl.BlockSpec((bm, tn), lambda i, j: (i, j)),
            scratch_shapes=[pltpu.VMEM((bm, D), jnp.bfloat16)],   # LN cache
        ),
        compiler_params=pltpu.CompilerParams(
            # N innermost + "arbitrary": the LN scratch carries across the N
            # tiles of one row block; M stays "parallel" for megacore sharding.
            dimension_semantics=("parallel", "arbitrary"),
            vmem_limit_bytes=vmem_limit,
        ),
    )(x2, gamma, beta, w_bf16, wb_p)

    return out[:rows, :d_out].reshape(B, S, d_out)


def prenorm_linear(x, gamma, beta, w, w_bias, *, block_rows=None, block_cols=512):
    """Convenience wrapper matching the original signature.  For repeated calls
    with the same weights, call prepare_weights() once and reuse
    prenorm_linear_prepared() directly (weight cast/pad is then off the hot path)."""
    w_bf16, wb_p, d_out, tn = prepare_weights(w, w_bias, block_cols=block_cols)
    return prenorm_linear_prepared(x, gamma, beta, w_bf16, wb_p,
                                   d_out=d_out, tn=tn, block_rows=block_rows)


def reference(x, gamma, beta, w, w_bias):
    # Mirrors the kernel's numerics: f32 LayerNorm, bf16 matmul with f32 accum.
    xf = x.astype(jnp.float32)
    mean = jnp.mean(xf, axis=-1, keepdims=True)
    var = jnp.mean((xf - mean) ** 2, axis=-1, keepdims=True)
    xn = (xf - mean) * jax.lax.rsqrt(var + EPS)
    y = xn * gamma + beta
    out = jnp.dot(y.astype(jnp.bfloat16), w.astype(jnp.bfloat16),
                  preferred_element_type=jnp.float32) + w_bias
    return out.astype(x.dtype)


if __name__ == "__main__":
    def make_inputs(key, B, S, D, D_out):
        kx, kg, kb, kw, kwb = jax.random.split(key, 5)
        x = jax.random.normal(kx, (B, S, D), dtype=jnp.float32)
        gamma = 1.0 + 0.1 * jax.random.normal(kg, (1, D), dtype=jnp.float32)
        beta = 0.05 * jax.random.normal(kb, (1, D), dtype=jnp.float32)
        w = 0.1 * jax.random.normal(kw, (D, D_out), dtype=jnp.float32)
        w_bias = 0.05 * jax.random.normal(kwb, (1, D_out), dtype=jnp.float32)
        return x, gamma, beta, w, w_bias

    # Case 1: canonical small PreNorm shape (batch=2, seq=8, hidden=32),
    # using the "prepared weights" fast path (cast/pad hoisted off the hot path).
    B, S, D = 2, 8, 32
    x, gamma, beta, w, w_bias = make_inputs(jax.random.PRNGKey(0), B, S, D, D)
    w_bf16, wb_p, d_out, tn = prepare_weights(w, w_bias)
    out = jax.block_until_ready(
        prenorm_linear_prepared(x, gamma, beta, w_bf16, wb_p, d_out=d_out, tn=tn))
    ref = reference(x, gamma, beta, w, w_bias)
    assert out.shape == (B, S, D), out.shape
    assert jnp.allclose(out, ref, atol=1e-3, rtol=1e-3), \
        f"max err {float(jnp.max(jnp.abs(out - ref)))}"

    # Case 2: row count not divisible by the row tile -> exercises the padding
    # path and the convenience wrapper.
    B2, S2 = 3, 5
    x2, g2, b2, w2, wb2 = make_inputs(jax.random.PRNGKey(1), B2, S2, D, D)
    out2 = jax.block_until_ready(prenorm_linear(x2, g2, b2, w2, wb2))
    ref2 = reference(x2, g2, b2, w2, wb2)
    assert out2.shape == (B2, S2, D), out2.shape
    assert jnp.allclose(out2, ref2, atol=1e-3, rtol=1e-3), \
        f"max err {float(jnp.max(jnp.abs(out2 - ref2)))}"

    print("KERNEL_OK")
</pallas_src>

<mosaic_0001>
module attributes {stable_mosaic.version = 11 : i64} {
  func.func @prenorm_kernel(%arg0: i32, %arg1: i32, %arg2: memref<8x32xf32, #tpu.memory_space<vmem>>, %arg3: memref<1x32xf32, #tpu.memory_space<vmem>>, %arg4: memref<1x32xf32, #tpu.memory_space<vmem>>, %arg5: memref<32x128xbf16, #tpu.memory_space<vmem>>, %arg6: memref<1x128xf32, #tpu.memory_space<vmem>>, %arg7: memref<8x128xf32, #tpu.memory_space<vmem>>, %arg8: memref<8x32xbf16, #tpu.memory_space<vmem>>) attributes {dimension_semantics = [#tpu.dimension_semantics<parallel>, #tpu.dimension_semantics<arbitrary>], iteration_bounds = array<i64: 2, 1>, scalar_prefetch = 0 : i64, scratch_operands = 1 : i64, tpu.core_type = #tpu.core_type<tc>, window_params = [{transform_indices = @transform_0, window_bounds = array<i64: 8, 32>}, {pipeline_mode = #tpu.pipeline_mode<synchronous>, transform_indices = @transform_1, window_bounds = array<i64: 1, 32>}, {pipeline_mode = #tpu.pipeline_mode<synchronous>, transform_indices = @transform_2, window_bounds = array<i64: 1, 32>}, {pipeline_mode = #tpu.pipeline_mode<synchronous>, transform_indices = @transform_3, window_bounds = array<i64: 32, 128>}, {pipeline_mode = #tpu.pipeline_mode<synchronous>, transform_indices = @transform_4, window_bounds = array<i64: 1, 128>}, {transform_indices = @transform_5, window_bounds = array<i64: 8, 128>}]} {
    %c0_i32 = arith.constant 0 : i32
    %0 = arith.cmpi eq, %arg1, %c0_i32 : i32
    %1 = arith.extui %0 : i1 to i32
    %c0_i32_0 = arith.constant 0 : i32
    %2 = arith.cmpi ne, %1, %c0_i32_0 : i32
    scf.if %2 {
      %c0_8 = arith.constant 0 : index
      %c0_9 = arith.constant 0 : index
      %10 = vector.load %arg2[%c0_8, %c0_9] : memref<8x32xf32, #tpu.memory_space<vmem>>, vector<8x32xf32>
      %cst_10 = arith.constant dense<0.000000e+00> : vector<8xf32>
      %11 = vector.multi_reduction <add>, %10, %cst_10 [1] : vector<8x32xf32> to vector<8xf32>
      %12 = vector.shape_cast %11 : vector<8xf32> to vector<8x1xf32>
      %cst_11 = arith.constant 3.200000e+01 : f32
      %13 = vector.broadcast %cst_11 : f32 to vector<8x1xf32>
      %14 = arith.divf %12, %13 : vector<8x1xf32>
      %15 = vector.broadcast %14 : vector<8x1xf32> to vector<8x32xf32>
      %16 = arith.subf %10, %15 : vector<8x32xf32>
      %17 = arith.mulf %16, %16 : vector<8x32xf32>
      %cst_12 = arith.constant dense<0.000000e+00> : vector<8xf32>
      %18 = vector.multi_reduction <add>, %17, %cst_12 [1] : vector<8x32xf32> to vector<8xf32>
      %19 = vector.shape_cast %18 : vector<8xf32> to vector<8x1xf32>
      %cst_13 = arith.constant 3.200000e+01 : f32
      %20 = vector.broadcast %cst_13 : f32 to vector<8x1xf32>
      %21 = arith.divf %19, %20 : vector<8x1xf32>
      %cst_14 = arith.constant 9.99999974E-6 : f32
      %22 = vector.broadcast %cst_14 : f32 to vector<8x1xf32>
      %23 = arith.addf %21, %22 : vector<8x1xf32>
      %24 = math.rsqrt %23 : vector<8x1xf32>
      %25 = vector.broadcast %24 : vector<8x1xf32> to vector<8x32xf32>
      %26 = arith.mulf %16, %25 : vector<8x32xf32>
      %c0_15 = arith.constant 0 : index
      %c0_16 = arith.constant 0 : index
      %27 = vector.load %arg3[%c0_15, %c0_16] : memref<1x32xf32, #tpu.memory_space<vmem>>, vector<1x32xf32>
      %28 = vector.broadcast %27 : vector<1x32xf32> to vector<8x32xf32>
      %29 = arith.mulf %26, %28 : vector<8x32xf32>
      %c0_17 = arith.constant 0 : index
      %c0_18 = arith.constant 0 : index
      %30 = vector.load %arg4[%c0_17, %c0_18] : memref<1x32xf32, #tpu.memory_space<vmem>>, vector<1x32xf32>
      %31 = vector.broadcast %30 : vector<1x32xf32> to vector<8x32xf32>
      %32 = arith.addf %29, %31 : vector<8x32xf32>
      %33 = arith.truncf %32 : vector<8x32xf32> to vector<8x32xbf16>
      %c0_19 = arith.constant 0 : index
      %c0_20 = arith.constant 0 : index
      %34 = vector.load %arg8[%c0_19, %c0_20] : memref<8x32xbf16, #tpu.memory_space<vmem>>, vector<8x32xbf16>
      tpu.vector_store %arg8[%c0_19, %c0_20], %33 {strides = array<i32>} : memref<8x32xbf16, #tpu.memory_space<vmem>>, vector<8x32xbf16>,
    } else {
    }
    %c0 = arith.constant 0 : index
    %c0_1 = arith.constant 0 : index
    %3 = vector.load %arg8[%c0, %c0_1] : memref<8x32xbf16, #tpu.memory_space<vmem>>, vector<8x32xbf16>
    %c0_2 = arith.constant 0 : index
    %c0_3 = arith.constant 0 : index
    %4 = vector.load %arg5[%c0_2, %c0_3] : memref<32x128xbf16, #tpu.memory_space<vmem>>, vector<32x128xbf16>
    %cst = arith.constant dense<0.000000e+00> : vector<8x128xf32>
    %5 = tpu.matmul %3, %4, %cst {dimension_numbers = #tpu.dot_dimension_numbers<[1], [0], [0], [1], [0, 0, 1, 1], [], []>} : vector<8x32xbf16>, vector<32x128xbf16>, vector<8x128xf32> -> vector<8x128xf32>
    %c0_4 = arith.constant 0 : index
    %c0_5 = arith.constant 0 : index
    %6 = vector.load %arg6[%c0_4, %c0_5] : memref<1x128xf32, #tpu.memory_space<vmem>>, vector<1x128xf32>
    %7 = vector.broadcast %6 : vector<1x128xf32> to vector<8x128xf32>
    %8 = arith.addf %5, %7 : vector<8x128xf32>
    %c0_6 = arith.constant 0 : index
    %c0_7 = arith.constant 0 : index
    %9 = vector.load %arg7[%c0_6, %c0_7] : memref<8x128xf32, #tpu.memory_space<vmem>>, vector<8x128xf32>
    tpu.vector_store %arg7[%c0_6, %c0_7], %8 {strides = array<i32>} : memref<8x128xf32, #tpu.memory_space<vmem>>, vector<8x128xf32>,
    return
  }
  func.func @transform_0(%arg0: i32, %arg1: i32) -> (i32, i32) {
    %c0_i32 = arith.constant 0 : i32
    %c0_i32_0 = arith.constant 0 : i32
    return %arg0, %c0_i32 : i32, i32
  }
  func.func @transform_1(%arg0: i32, %arg1: i32) -> (i32, i32) {
    %c0_i32 = arith.constant 0 : i32
    %c0_i32_0 = arith.constant 0 : i32
    %c0_i32_1 = arith.constant 0 : i32
    return %c0_i32, %c0_i32_0 : i32, i32
  }
  func.func @transform_2(%arg0: i32, %arg1: i32) -> (i32, i32) {
    %c0_i32 = arith.constant 0 : i32
    %c0_i32_0 = arith.constant 0 : i32
    %c0_i32_1 = arith.constant 0 : i32
    return %c0_i32, %c0_i32_0 : i32, i32
  }
  func.func @transform_3(%arg0: i32, %arg1: i32) -> (i32, i32) {
    %c0_i32 = arith.constant 0 : i32
    %c0_i32_0 = arith.constant 0 : i32
    return %c0_i32, %arg1 : i32, i32
  }
  func.func @transform_4(%arg0: i32, %arg1: i32) -> (i32, i32) {
    %c0_i32 = arith.constant 0 : i32
    %c0_i32_0 = arith.constant 0 : i32
    return %c0_i32, %arg1 : i32, i32
  }
  func.func @transform_5(%arg0: i32, %arg1: i32) -> (i32, i32) {
    %c0_i32 = arith.constant 0 : i32
    return %arg0, %arg1 : i32, i32
  }
}

</mosaic_0001>

<llo_original>
// kernel: prenorm_linear_prepared.1
$region0: #{prenorm_linear_prepared.1}
  #allocation0 [shape = 'u32[]', space=smem, size = 0x4, offset = 0x4, fixed_abs, tag = 'smem constant byte address 0x4 - core index']
  #allocation1 [shape = 'u32[144,128]{1,0:T(1,128)}', space=vmem, size = 0x12000, scoped, tag = 'internal scratch']
  #allocation2 [shape = 'bf16[8,32]{1,0:T(8,128)(2,1)}', space=vmem, size = 0x800, scoped, tag = 'scratch operand']
  %s0 = inlined_call_operand.hbm [shape: f32[16,32], index: 0, kind: input, shape index: {}]
  %s1 = inlined_call_operand.vmem [shape: f32[1,32], index: 1, kind: input, shape index: {}]
  %s2 = inlined_call_operand.vmem [shape: f32[1,32], index: 2, kind: input, shape index: {}]
  %s3 = inlined_call_operand.hbm [shape: bf16[32,128], index: 3, kind: input, shape index: {}]
  %s4 = inlined_call_operand.vmem [shape: f32[1,128], index: 4, kind: input, shape index: {}]
  %s5 = inlined_call_operand.vmem [shape: f32[16,128], index: 5, kind: output, shape index: {}]
  %s6 = sld [smem:[#allocation0]]
  $region65: #{prenorm_linear_prepared.1} parent=0
    _
  %s8 = ssub.s32 1, %s6
  %s9 = scalar_select 0, %s8, %s6
  $region1: #{prenorm_linear_prepared.1} parent=0
    #allocation3 [shape = 'u8[8192]{0}', space=vmem, size = 0x2000, scoped, tag = 'input window, operand 0']
    #allocation4 [shape = 's32[2]{0}', space=sflag, size = 0x8, scoped, tag = 'scoped memory for prenorm_linear_prepared.1']
    #allocation5 [shape = 'u8[8192]{0}', space=vmem, size = 0x2000, scoped, tag = 'input window, operand 3, single buffered']
    #allocation6 [shape = 's32[1]{0}', space=sflag, size = 0x4, scoped, tag = 'scoped memory for prenorm_linear_prepared.1']
    %10 = vsyncpa [#allocation4], 0
    %s11 = scalar_lea.sflag [#allocation4], 1
    %12 = vsyncpa %s11, 0
    %13 = vsyncpa [#allocation6], 0
    loop: start=0, step=1, limit=4
    $region2: #{prenorm_linear_prepared.1} parent=1 // loop_pre_header
      _
    $region3: #{prenorm_linear_prepared.1} parent=1 // loop_header
      %s15 = sphi 0, %s19
      %p16 = scmp.ge.s32.totalorder %s15, 4
      %s22 = sphi 0, %s34
      %s23 = sphi 0, %s30
      %s24 = sphi 0, %s22
      %s25 = sphi 0, %s23
      %s26 = sphi 0, %s24
      %s27 = sphi 0, %s25
      %s37 = sphi 0, %s39
      %s40 = sphi 0, %s37
      %s41 = sphi 0, %s40
      %s57 = sphi 0, %s41
      %s61 = sphi 0, %s61
      %s63 = sphi 0, %s61
      %s64 = sphi 0, %s63
      %s78 = sphi 0, %s64
      %s82 = sphi 0, %s82
      %s84 = sphi 0, %s82
      %s85 = sphi 0, %s84
      %s99 = sphi 0, %s85
      %s105 = sphi 0, %s107
      %s108 = sphi 0, %s105
      %s109 = sphi 0, %s108
      %s125 = sphi 0, %s109
      %s131 = sphi 0, %s133
      %s134 = sphi 0, %s131
      %s135 = sphi 0, %s134
      %s151 = sphi 0, %s135
      %s159 = sphi 0, %s161
      %s162 = sphi 0, %s159
      %s163 = sphi 0, %s162
      %s179 = sphi 0, %s163
    $region4: #{prenorm_linear_prepared.1} parent=1 // loop_header_branch
      %18 = sbr.rel (%p16) target = $region8
    $region5: #{prenorm_linear_prepared.1} parent=1 // loop_body
      %s20 = ssub.s32 %s15, 1
      %s21 = ssub.s32 %s15, 2
      %s28 = sadd.s32 1, %s23
      %p29 = scmp.ge.s32.totalorder %s28, 1
      %s30 = scalar_select %p29, 0, %s28
      %s31 = sadd.s32 1, %s22
      %s32 = scalar_select %p29, %s31, %s22
      %p33 = scmp.ge.s32.totalorder %s32, 2
      %s34 = scalar_select %p33, 0, %s32
      %s35 = ssub.s32 %s22, %s34
      %p36 = scmp.eq.s32.totalorder %s35, 0
      %s38 = sadd.s32 %s37, 1
      %s39 = scalar_select %p36, %s37, %s38
      %p42 = pneg %p36
      %p43 = scmp.eq.s32.totalorder %s15, 1
      %p44 = por %p42, %p43
      %p45 = scmp.ne.s32.totalorder %s37, %s40
      %p46 = scmp.eq.s32.totalorder %s15, 0
      %p47 = por %p45, %p46
      %p48 = scmp.ne.s32.totalorder %s37, %s40
      %p49 = scmp.eq.s32.totalorder %s20, 1
      %p50 = por %p48, %p49
      %p51 = scmp.ne.s32.totalorder %s40, %s41
      %p52 = scmp.eq.s32.totalorder %s20, 0
      %p53 = por %p51, %p52
      %p54 = scmp.ne.s32.totalorder %s40, %s41
      %p55 = scmp.eq.s32.totalorder %s21, 1
      %p56 = por %p54, %p55
      %p58 = scmp.ne.s32.totalorder %s41, %s57
      %p59 = scmp.eq.s32.totalorder %s21, 0
      %p60 = por %p58, %p59
      %s62 = sadd.s32 %s61, 1
      %p65 = scmp.eq.s32.totalorder %s15, 1
      %p66 = scmp.ne.s32.totalorder %s61, %s63
      %p67 = scmp.eq.s32.totalorder %s15, 0
      %p68 = por %p66, %p67
      %p69 = scmp.ne.s32.totalorder %s61, %s63
      %p70 = scmp.eq.s32.totalorder %s20, 1
      %p71 = por %p69, %p70
      %p72 = scmp.ne.s32.totalorder %s63, %s64
      %p73 = scmp.eq.s32.totalorder %s20, 0
      %p74 = por %p72, %p73
      %p75 = scmp.ne.s32.totalorder %s63, %s64
      %p76 = scmp.eq.s32.totalorder %s21, 1
      %p77 = por %p75, %p76
      %p79 = scmp.ne.s32.totalorder %s64, %s78
      %p80 = scmp.eq.s32.totalorder %s21, 0
      %p81 = por %p79, %p80
      %s83 = sadd.s32 %s82, 1
      %p86 = scmp.eq.s32.totalorder %s15, 1
      %p87 = scmp.ne.s32.totalorder %s82, %s84
      %p88 = scmp.eq.s32.totalorder %s15, 0
      %p89 = por %p87, %p88
      %p90 = scmp.ne.s32.totalorder %s82, %s84
      %p91 = scmp.eq.s32.totalorder %s20, 1
      %p92 = por %p90, %p91
      %p93 = scmp.ne.s32.totalorder %s84, %s85
      %p94 = scmp.eq.s32.totalorder %s20, 0
      %p95 = por %p93, %p94
      %p96 = scmp.ne.s32.totalorder %s84, %s85
      %p97 = scmp.eq.s32.totalorder %s21, 1
      %p98 = por %p96, %p97
      %p100 = scmp.ne.s32.totalorder %s85, %s99
      %p101 = scmp.eq.s32.totalorder %s21, 0
      %p102 = por %p100, %p101
      %s103 = ssub.s32 %s23, %s30
      %p104 = scmp.eq.s32.totalorder %s103, 0
      %s106 = sadd.s32 %s105, 1
      %s107 = scalar_select %p104, %s105, %s106
      %p110 = pneg %p104
      %p111 = scmp.eq.s32.totalorder %s15, 1
      %p112 = por %p110, %p111
      %p113 = scmp.ne.s32.totalorder %s105, %s108
      %p114 = scmp.eq.s32.totalorder %s15, 0
      %p115 = por %p113, %p114
      %p116 = scmp.ne.s32.totalorder %s105, %s108
      %p117 = scmp.eq.s32.totalorder %s20, 1
      %p118 = por %p116, %p117
      %p119 = scmp.ne.s32.totalorder %s108, %s109
      %p120 = scmp.eq.s32.totalorder %s20, 0
      %p121 = por %p119, %p120
      %p122 = scmp.ne.s32.totalorder %s108, %s109
      %p123 = scmp.eq.s32.totalorder %s21, 1
      %p124 = por %p122, %p123
      %p126 = scmp.ne.s32.totalorder %s109, %s125
      %p127 = scmp.eq.s32.totalorder %s21, 0
      %p128 = por %p126, %p127
      %s129 = ssub.s32 %s23, %s30
      %p130 = scmp.eq.s32.totalorder %s129, 0
      %s132 = sadd.s32 %s131, 1
      %s133 = scalar_select %p130, %s131, %s132
      %p136 = pneg %p130
      %p137 = scmp.eq.s32.totalorder %s15, 1
      %p138 = por %p136, %p137
      %p139 = scmp.ne.s32.totalorder %s131, %s134
      %p140 = scmp.eq.s32.totalorder %s15, 0
      %p141 = por %p139, %p140
      %p142 = scmp.ne.s32.totalorder %s131, %s134
      %p143 = scmp.eq.s32.totalorder %s20, 1
      %p144 = por %p142, %p143
      %p145 = scmp.ne.s32.totalorder %s134, %s135
      %p146 = scmp.eq.s32.totalorder %s20, 0
      %p147 = por %p145, %p146
      %p148 = scmp.ne.s32.totalorder %s134, %s135
      %p149 = scmp.eq.s32.totalorder %s21, 1
      %p150 = por %p148, %p149
      %p152 = scmp.ne.s32.totalorder %s135, %s151
      %p153 = scmp.eq.s32.totalorder %s21, 0
      %p154 = por %p152, %p153
      %s155 = ssub.s32 %s22, %s34
      %s156 = ssub.s32 %s23, %s30
      %s157 = sor.u32 %s155, %s156
      %p158 = scmp.eq.s32.totalorder %s157, 0
      %s160 = sadd.s32 %s159, 1
      %s161 = scalar_select %p158, %s159, %s160
      %p164 = pneg %p158
      %p165 = scmp.eq.s32.totalorder %s15, 1
      %p166 = por %p164, %p165
      %p167 = scmp.ne.s32.totalorder %s159, %s162
      %p168 = scmp.eq.s32.totalorder %s15, 0
      %p169 = por %p167, %p168
      %p170 = scmp.ne.s32.totalorder %s159, %s162
      %p171 = scmp.eq.s32.totalorder %s20, 1
      %p172 = por %p170, %p171
      %p173 = scmp.ne.s32.totalorder %s162, %s163
      %p174 = scmp.eq.s32.totalorder %s20, 0
      %p175 = por %p173, %p174
      %p176 = scmp.ne.s32.totalorder %s162, %s163
      %p177 = scmp.eq.s32.totalorder %s21, 1
      %p178 = por %p176, %p177
      %p180 = scmp.ne.s32.totalorder %s163, %s179
      %p181 = scmp.eq.s32.totalorder %s21, 0
      %p182 = por %p180, %p181
      %p183 = scmp.le.s32.totalorder 1, %s15
      %p184 = scmp.lt.s32.totalorder %s15, 3
      %p185 = pnand %p183, %p184
      %p186 = pneg %p185
      // Predicated region
      $region9: #{prenorm_linear_prepared.1} parent=5 // pred_check
        _
      $region10: #{prenorm_linear_prepared.1} parent=5 // pred_check_branch
        %188 = sbr.rel (%p185) target = $region12
      $region11: #{prenorm_linear_prepared.1} parent=5 // pred_region
        %s189 = ssub.s32 %s15, 1
        // Predicated region
        $region13: #{prenorm_linear_prepared.1} parent=11 // pred_check
          %p190 = pneg %p74
        $region14: #{prenorm_linear_prepared.1} parent=11 // pred_check_branch
          %192 = sbr.rel (%p190) target = $region16
        $region15: #{prenorm_linear_prepared.1} parent=11 // pred_region
          _
        $region16: #{prenorm_linear_prepared.1} parent=11 // pred_fallthru
          _
        // Predicated region
        $region17: #{prenorm_linear_prepared.1} parent=11 // pred_check
          %p193 = pneg %p95
        $region18: #{prenorm_linear_prepared.1} parent=11 // pred_check_branch
          %195 = sbr.rel (%p193) target = $region20
        $region19: #{prenorm_linear_prepared.1} parent=11 // pred_region
          _
        $region20: #{prenorm_linear_prepared.1} parent=11 // pred_fallthru
          _
        // Predicated region
        $region21: #{prenorm_linear_prepared.1} parent=11 // pred_check
          %p196 = pneg %p121
        $region22: #{prenorm_linear_prepared.1} parent=11 // pred_check_branch
          %198 = sbr.rel (%p196) target = $region24
        $region23: #{prenorm_linear_prepared.1} parent=11 // pred_region
          %s200 = ssub.s32 256, 256
          %201 = vsyncadd [#allocation6], %s200
          %s202 = smul.addr %s25, 64
          %s203 = scalar_lea.hbm %s3, %s202
          %s204 = sshll.u32 [#allocation5], 4
          %s205 = int_to_ptr.vmem [resolvable:$true] %s204
          %210 = dma.hbm_to_vmem [thread:$0]  %s203, 256, %s205, [#allocation6], 64, 64, 4
        $region24: #{prenorm_linear_prepared.1} parent=11 // pred_fallthru
          _
        // Predicated region
        $region25: #{prenorm_linear_prepared.1} parent=11 // pred_check
          %p211 = pneg %p147
        $region26: #{prenorm_linear_prepared.1} parent=11 // pred_check_branch
          %213 = sbr.rel (%p211) target = $region28
        $region27: #{prenorm_linear_prepared.1} parent=11 // pred_region
          %p214 = scmp.lt.s32.totalorder %s25, 0
          %s215 = scalar_select %p214, %s25, 0
          %s216 = scalar_lea.vmem %s4, %s215
        $region28: #{prenorm_linear_prepared.1} parent=11 // pred_fallthru
          _
      $region12: #{prenorm_linear_prepared.1} parent=5 // pred_fallthru
        _
      %p217 = scmp.lt.s32.totalorder %s15, 2
      // Predicated region
      $region29: #{prenorm_linear_prepared.1} parent=5 // pred_check
        %p218 = pneg %p217
      $region30: #{prenorm_linear_prepared.1} parent=5 // pred_check_branch
        %220 = sbr.rel (%p218) target = $region32
      $region31: #{prenorm_linear_prepared.1} parent=5 // pred_region
        // Predicated region
        $region33: #{prenorm_linear_prepared.1} parent=31 // pred_check
          %p221 = pneg %p47
        $region34: #{prenorm_linear_prepared.1} parent=31 // pred_check_branch
          %223 = sbr.rel (%p221) target = $region36
        $region35: #{prenorm_linear_prepared.1} parent=31 // pred_region
          %s224 = sand.u32 %s37, 1
          %s225 = scalar_lea.sflag [#allocation4], %s224
          %s226 = sand.u32 %s37, 1
          %s227 = smul.addr %s226, 8
          %s228 = scalar_lea.vmem [#allocation3], %s227
          %s230 = ssub.s32 128, 128
          %231 = vsyncadd %s225, %s230
          %s232 = smul.addr %s22, 128
          %s233 = scalar_lea.hbm %s0, %s232
          %s235 = sshll.u32 %s228, 4
          %s236 = int_to_ptr.vmem [resolvable:$true] %s235
          %238 = dma.hbm_to_vmem [thread:$0]  %s233, 128, %s236, %s225
        $region36: #{prenorm_linear_prepared.1} parent=31 // pred_fallthru
          _
      $region32: #{prenorm_linear_prepared.1} parent=5 // pred_fallthru
        _
      %p239 = scmp.le.s32.totalorder 1, %s15
      %p240 = scmp.lt.s32.totalorder %s15, 3
      %p241 = pnand %p239, %p240
      %p242 = pneg %p241
      // Predicated region
      $region37: #{prenorm_linear_prepared.1} parent=5 // pred_check
        _
      $region38: #{prenorm_linear_prepared.1} parent=5 // pred_check_branch
        %244 = sbr.rel (%p241) target = $region40
      $region39: #{prenorm_linear_prepared.1} parent=5 // pred_region
        %s245 = ssub.s32 %s15, 1
        %s246 = sand.u32 %s40, 1
        %s247 = scalar_lea.sflag [#allocation4], %s246
        %s248 = sand.u32 %s40, 1
        %s249 = smul.addr %s248, 8
        %s250 = scalar_lea.vmem [#allocation3], %s249
        // Predicated region
        $region41: #{prenorm_linear_prepared.1} parent=39 // pred_check
          %p251 = pneg %p53
        $region42: #{prenorm_linear_prepared.1} parent=39 // pred_check_branch
          %253 = sbr.rel (%p251) target = $region44
        $region43: #{prenorm_linear_prepared.1} parent=39 // pred_region
          %254 = dma.done %s247, 128
        $region44: #{prenorm_linear_prepared.1} parent=39 // pred_fallthru
          _
        // Predicated region
        $region45: #{prenorm_linear_prepared.1} parent=39 // pred_check
          %p255 = pneg %p121
        $region46: #{prenorm_linear_prepared.1} parent=39 // pred_check_branch
          %257 = sbr.rel (%p255) target = $region48
        $region47: #{prenorm_linear_prepared.1} parent=39 // pred_region
          %258 = dma.done [#allocation6], 256
        $region48: #{prenorm_linear_prepared.1} parent=39 // pred_fallthru
          _
        %s259 = sand.u32 %s40, 1
        %s260 = scalar_lea.sflag [#allocation4], %s259
        %s261 = sand.u32 %s40, 1
        %s262 = smul.addr %s261, 8
        %s263 = scalar_lea.vmem [#allocation3], %s262
        %p264 = pneg %p53
        %p265 = pneg %p50
        %p266 = pneg %p74
        %p267 = pneg %p71
        %p268 = pneg %p95
        %p269 = pneg %p92
        %p270 = pneg %p121
        %p271 = pneg %p118
        %p272 = scmp.lt.s32.totalorder %s25, 0
        %s273 = scalar_select %p272, %s25, 0
        %s274 = scalar_lea.vmem %s4, %s273
        %p275 = pneg %p147
        %p276 = pneg %p144
        %p277 = pneg %p175
        %p278 = pneg %p172
        %p279 = scmp.lt.s32.totalorder %s24, 1
        %s280 = scalar_select %p279, %s24, 1
        %p281 = scmp.lt.s32.totalorder %s25, 0
        %s282 = scalar_select %p281, %s25, 0
        %s283 = sadd.s32 %s282, %s280
        %s284 = smul.addr %s283, 8
        %s285 = scalar_lea.vmem %s5, %s284
        %p286 = scmp.lt.s32.totalorder %s25, 0
        %s287 = scalar_select %p286, %s25, 0
        %s288 = scalar_lea.vmem %s4, %s287
        %p289 = scmp.lt.s32.totalorder %s24, 1
        %s290 = scalar_select %p289, %s24, 1
        %p291 = scmp.lt.s32.totalorder %s25, 0
        %s292 = scalar_select %p291, %s25, 0
        %s293 = sadd.s32 %s292, %s290
        %s294 = smul.addr %s293, 8
        %s295 = scalar_lea.vmem %s5, %s294
        %p297 = scmp.eq.s32.totalorder %s25, 0
        // Predicated region
        $region49: #{prenorm_linear_prepared.1} parent=39 // pred_check
          %p298 = pneg %p297
        $region50: #{prenorm_linear_prepared.1} parent=39 // pred_check_branch
          %300 = sbr.rel (%p298) target = $region52
        $region51: #{prenorm_linear_prepared.1} parent=39 // pred_region
          %v301 = vld [vmem:[%s250] sm:$0xff]
          %vm302 = vcmask 261120
          %v303 = vsel %vm302, %v301, 0.0
          %304 = vadd.xlane.f32.xlu0 %v303
          %v305 = vpop.xlane.xlu0 %304
          %v306 = vrcp.pop 32.0
          %v307 = vmul.f32 %v305, %v306
          %v308 = vsub.f32 %v301, %v307
          %v309 = vmul.f32 %v308, %v308
          %v310 = vsel %vm302, %v309, 0.0
          %311 = vadd.xlane.f32.xlu0 %v310
          %v312 = vpop.xlane.xlu0 %311
          %v313 = vmul.f32 %v312, %v306
          %v314 = vadd.f32 %v313, 1e-05
          %v315 = vrsqrt.pop %v314
          %v316 = vmul.f32 %v308, %v315
          %v317 = vld [vmem:[%s1] sm:$0x1]
          %v319 = vlaneseq
          %v320 = vshrl.u32 %v319, 7
          %v321 = vsub.s32 0, %v320
          %v322 = vrot.slane %v317, %v321
          %v324 = vmul.f32 %v316, %v322
          %v325 = vld [vmem:[%s2] sm:$0x1]
          %v327 = vlaneseq
          %v328 = vshrl.u32 %v327, 7
          %v329 = vsub.s32 0, %v328
          %v330 = vrot.slane %v325, %v329
          %v332 = vadd.f32 %v324, %v330
          %v333 = vpack.c.bf16 %v332, %v332
          %vm334 = vcmask 257024
          %335 = vst.msk [vmem:[#allocation2] sm:$0xf] %vm334, %v333
        $region52: #{prenorm_linear_prepared.1} parent=39 // pred_fallthru
          _
        %v336 = vld [vmem:[#allocation2] sm:$0xf]
        %v337 = vld [vmem:[#allocation5] sm:$0xf]
        %v338 = vld [vmem:[#allocation5 + $0x4] sm:$0xf]
        %v339 = vld [vmem:[#allocation5 + $0x8] sm:$0xf]
        %v340 = vld [vmem:[#allocation5 + $0xc] sm:$0xf]
        %v341 = vld [vmem:[%s288] sm:$0x1]
        %v343 = vlaneseq
        %v344 = vshrl.u32 %v343, 7
        %v345 = vsub.s32 0, %v344
        %v346 = vrot.slane %v341, %v345
        %v352 = vunpack.c.l.b16 %v337
        %v353 = vunpack.c.l.b16 %v338
        %v354 = vunpack.c.l.b16 %v339
        %v355 = vunpack.c.l.b16 %v340
        %v356 = vpack.c.b16 %v353, %v352
        %v357 = vpack.c.b16 %v355, %v354
        %vm360 = vcmask 261120
        %v362 = vsel %vm360, %v336, 0
        %364 = vmatprep.subr.bf16.mxu0 0
        %365 = vmatpush1.bf16.msra.mxu0 %v356
        %366 = vmatprep.subr.bf16.mxu0 0
        %367 = vmatpush1.bf16.msra.mxu0 %v357
        %368 = vmatprep.subr.bf16.mxu0 0
        %369 = vmatpush1.bf16.msra.mxu0 0
        %370 = vmatprep.subr.bf16.mxu0 0
        %371 = vmatpush1.bf16.msra.mxu0 0
        %372 = vmatprep.subr.bf16.mxu0 0
        %373 = vmatpush1.bf16.msra.mxu0 0
        %374 = vmatprep.subr.bf16.mxu0 0
        %375 = vmatpush1.bf16.msra.mxu0 0
        %376 = vmatprep.subr.bf16.mxu0 0
        %377 = vmatpush1.bf16.msra.mxu0 0
        %378 = vmatprep.subr.bf16.mxu0 0
        %379 = vmatpush1.bf16.msra.mxu0 0
        %380 = vmatprep.subr.bf16.mxu0 0
        %381 = vmatpush1.bf16.msra.mxu0 0
        %382 = vmatprep.subr.bf16.mxu0 0
        %383 = vmatpush1.bf16.msra.mxu0 0
        %384 = vmatprep.subr.bf16.mxu0 0
        %385 = vmatpush1.bf16.msra.mxu0 0
        %386 = vmatprep.subr.bf16.mxu0 0
        %387 = vmatpush1.bf16.msra.mxu0 0
        %388 = vmatprep.subr.bf16.mxu0 0
        %389 = vmatpush1.bf16.msra.mxu0 0
        %390 = vmatprep.subr.bf16.mxu0 0
        %391 = vmatpush1.bf16.msra.mxu0 0
        %392 = vmatprep.subr.bf16.mxu0 0
        %393 = vmatpush1.bf16.msra.mxu0 0
        %394 = vmatprep.subr.bf16.mxu0 0
        %395 = vmatpush1.bf16.msra.mxu0 0
        %396 = vmatprep.mubr.bf16.mxu0 0
        %397 = vmatmul.mubr.bf16.gmra.mrb[0].mxu0 %v362
        %v398 = vpop.f32.mrb[0].mxu0
        %v399 = vadd.f32 %v346, %v398
        %v400 = vpop.f32.mrb[0].mxu0
        %v401 = vpop.f32.mrb[0].mxu0
        %v402 = vpop.f32.mrb[0].mxu0
        %403 = vdwg.mxu0
        %404 = vst [vmem:[%s295] sm:$0xff] %v399
        %p405 = scmp.lt.s32.totalorder %s24, 1
        %s406 = scalar_select %p405, %s24, 1
        %p407 = scmp.lt.s32.totalorder %s25, 0
        %s408 = scalar_select %p407, %s25, 0
        %s409 = sadd.s32 %s408, %s406
        %s410 = smul.addr %s409, 8
        %s411 = scalar_lea.vmem %s5, %s410
        // Predicated region
        $region53: #{prenorm_linear_prepared.1} parent=39 // pred_check
          %p412 = pneg %p172
        $region54: #{prenorm_linear_prepared.1} parent=39 // pred_check_branch
          %414 = sbr.rel (%p412) target = $region56
        $region55: #{prenorm_linear_prepared.1} parent=39 // pred_region
          _
        $region56: #{prenorm_linear_prepared.1} parent=39 // pred_fallthru
          _
      $region40: #{prenorm_linear_prepared.1} parent=5 // pred_fallthru
        _
      %p415 = scmp.le.s32.totalorder 2, %s15
      // Predicated region
      $region57: #{prenorm_linear_prepared.1} parent=5 // pred_check
        %p416 = pneg %p415
      $region58: #{prenorm_linear_prepared.1} parent=5 // pred_check_branch
        %418 = sbr.rel (%p416) target = $region60
      $region59: #{prenorm_linear_prepared.1} parent=5 // pred_region
        %s419 = ssub.s32 %s15, 2
        // Predicated region
        $region61: #{prenorm_linear_prepared.1} parent=59 // pred_check
          %p420 = pneg %p178
        $region62: #{prenorm_linear_prepared.1} parent=59 // pred_check_branch
          %422 = sbr.rel (%p420) target = $region64
        $region63: #{prenorm_linear_prepared.1} parent=59 // pred_region
          %p423 = scmp.lt.s32.totalorder %s26, 1
          %s424 = scalar_select %p423, %s26, 1
          %p425 = scmp.lt.s32.totalorder %s27, 0
          %s426 = scalar_select %p425, %s27, 0
          %s427 = sadd.s32 %s426, %s424
          %s428 = smul.addr %s427, 8
          %s429 = scalar_lea.vmem %s5, %s428
        $region64: #{prenorm_linear_prepared.1} parent=59 // pred_fallthru
          _
      $region60: #{prenorm_linear_prepared.1} parent=5 // pred_fallthru
        _
    $region6: #{prenorm_linear_prepared.1} parent=1 // loop_footer
      %s19 = sadd.s32 1, %s15
    $region7: #{prenorm_linear_prepared.1} parent=1 // loop_footer_branch
      %14 = sbr.rel target = $region3
    $region8: #{prenorm_linear_prepared.1} parent=1 // loop_exit
      _
    %430 = vsyncpa [#allocation4], 1
    %s431 = scalar_lea.sflag [#allocation4], 1
    %432 = vsyncpa %s431, 1
    %433 = vsyncpa [#allocation6], 1

</llo_original>
